<compile_context>
chip_gen: v7x
topology: tpu7x:2x2x1
jax: 0.10.0
libtpu: 0.0.40
codegen_flags: <defaults>
</compile_context>

<pallas_src>
import math

import jax
import jax.numpy as jnp
from jax import lax
from jax.experimental import pallas as pl
from jax.experimental.pallas import tpu as pltpu


# ---------------------------------------------------------------------------
# Kernel 1: word_projection (Linear H -> F), tiled over (batch, seq tiles).
# ---------------------------------------------------------------------------
def _word_projection_kernel(x_ref, wp_ref, bp_ref, proj_ref):
    # x_ref: [1, Ts, H] bf16, wp_ref: [H, F] bf16, bp_ref: [1, F] f32,
    # proj_ref: [1, Ts, F] bf16
    x = x_ref[0]
    proj = jnp.dot(x, wp_ref[...], preferred_element_type=jnp.float32)
    proj = proj + bp_ref[...]
    proj_ref[0] = proj.astype(proj_ref.dtype)


# ---------------------------------------------------------------------------
# Kernel 2: multi-head self-attention + out_proj.
# Grid = (batch, q_tiles, heads); heads is innermost ("arbitrary") and the
# per-head out_proj contributions accumulate into the resident output block.
# ---------------------------------------------------------------------------
def _mha_head_kernel(projq_ref, projf_ref,
                     wq_ref, bq_ref, wk_ref, bk_ref, wv_ref, bv_ref,
                     wo_ref, bo_ref, out_ref):
    h = pl.program_id(2)
    bf16 = jnp.bfloat16

    proj_q = projq_ref[0]          # [Tq, F] bf16  (query rows of this tile)
    proj_f = projf_ref[0]          # [S,  F] bf16  (full sequence -> K/V)

    # Per-head in_proj (wq/bq already folded with 1/sqrt(head_dim)).
    q = jnp.dot(proj_q, wq_ref[0], preferred_element_type=jnp.float32) + bq_ref[0]
    k = jnp.dot(proj_f, wk_ref[0], preferred_element_type=jnp.float32) + bk_ref[0]
    v = jnp.dot(proj_f, wv_ref[0], preferred_element_type=jnp.float32) + bv_ref[0]

    # scores = q @ k^T without an explicit transpose (NT matmul on the MXU).
    scores = lax.dot_general(
        q.astype(bf16), k.astype(bf16),
        dimension_numbers=(((1,), (1,)), ((), ())),
        preferred_element_type=jnp.float32)            # [Tq, S] f32

    # Softmax: elementwise math in f32, denominator reciprocal on the EUP.
    scores = scores - jnp.max(scores, axis=-1, keepdims=True)
    p = jnp.exp(scores)
    p = p * pl.reciprocal(jnp.sum(p, axis=-1, keepdims=True), approx=True)

    ctx = jnp.dot(p.astype(bf16), v.astype(bf16),
                  preferred_element_type=jnp.float32)   # [Tq, hd] f32

    # This head's slice of out_proj; accumulate into the output block.
    contrib = jnp.dot(ctx.astype(bf16), wo_ref[0],
                      preferred_element_type=jnp.float32)  # [Tq, F] f32

    @pl.when(h == 0)
    def _init():
        out_ref[0] = bo_ref[...] + contrib              # bias added exactly once

    @pl.when(h != 0)
    def _accum():
        out_ref[0] = out_ref[0] + contrib


def _pick_tile(n, target):
    """Largest divisor of n that is <= target (prefer bf16-friendly multiples)."""
    if n <= target:
        return n
    for step in (16, 8, 1):
        for c in range(target, 0, -1):
            if n % c == 0 and c % step == 0:
                return c
    return n


def text_encoder_forward(word_embeddings, params, *, num_heads,
                         seq_tile=256, q_tile=256):
    """word_embeddings: [B, S, H] f32 (ClinicalBERT last_hidden_state).
    Returns attn_output [B, S, F] f32 (attention weights are not materialized,
    matching TextEncoder.forward which discards them)."""
    B, S, H = word_embeddings.shape
    F = params["wp_t"].shape[1]
    assert F % num_heads == 0
    hd = F // num_heads
    scale = 1.0 / math.sqrt(hd)
    bf16 = jnp.bfloat16

    # ---- wrapper-side weight packing (plain XLA ops, done once) -----------
    wp = params["wp_t"].astype(bf16)                              # [H, F]
    bp = params["bp"].astype(jnp.float32)                         # [1, F]
    win, bin_ = params["win_t"], params["bin"]                    # [F,3F],[1,3F]
    wq, wk, wv = win[:, :F] * scale, win[:, F:2 * F], win[:, 2 * F:]
    bq, bk, bv = bin_[:, :F] * scale, bin_[:, F:2 * F], bin_[:, 2 * F:]

    def stack_in(w):      # [F, F] -> [NH, F, hd]
        return w.reshape(F, num_heads, hd).transpose(1, 0, 2).astype(bf16)

    def stack_bias(b):    # [1, F] -> [NH, 1, hd]
        return b.reshape(num_heads, 1, hd).astype(jnp.float32)

    wq_h, wk_h, wv_h = stack_in(wq), stack_in(wk), stack_in(wv)
    bq_h, bk_h, bv_h = stack_bias(bq), stack_bias(bk), stack_bias(bv)
    wo_h = params["wo_t"].reshape(num_heads, hd, F).astype(bf16)  # [NH, hd, F]
    bo = params["bo"].astype(jnp.float32)                         # [1, F]

    x = word_embeddings.astype(bf16)  # halve HBM traffic for the activation

    cparams_proj = pltpu.CompilerParams(
        dimension_semantics=("parallel", "parallel"),
        vmem_limit_bytes=48 * 1024 * 1024)
    cparams_attn = pltpu.CompilerParams(
        dimension_semantics=("parallel", "parallel", "arbitrary"),
        vmem_limit_bytes=48 * 1024 * 1024)

    # ---- kernel 1: word_projection ----------------------------------------
    Ts = _pick_tile(S, seq_tile)
    proj = pl.pallas_call(
        _word_projection_kernel,
        out_shape=jax.ShapeDtypeStruct((B, S, F), bf16),
        grid_spec=pltpu.PrefetchScalarGridSpec(
            num_scalar_prefetch=0,
            grid=(B, S // Ts),
            in_specs=[
                pl.BlockSpec((1, Ts, H), lambda b, s: (b, s, 0)),
                pl.BlockSpec((H, F), lambda b, s: (0, 0)),
                pl.BlockSpec((1, F), lambda b, s: (0, 0)),
            ],
            out_specs=pl.BlockSpec((1, Ts, F), lambda b, s: (b, s, 0)),
        ),
        compiler_params=cparams_proj,
    )(x, wp, bp)

    # ---- kernel 2: multi-head self-attention -------------------------------
    Tq = _pick_tile(S, q_tile)
    out = pl.pallas_call(
        _mha_head_kernel,
        out_shape=jax.ShapeDtypeStruct((B, S, F), jnp.float32),
        grid_spec=pltpu.PrefetchScalarGridSpec(
            num_scalar_prefetch=0,
            grid=(B, S // Tq, num_heads),
            in_specs=[
                pl.BlockSpec((1, Tq, F), lambda b, q, h: (b, q, 0)),  # q rows
                pl.BlockSpec((1, S, F), lambda b, q, h: (b, 0, 0)),   # full seq
                pl.BlockSpec((1, F, hd), lambda b, q, h: (h, 0, 0)),  # Wq (scaled)
                pl.BlockSpec((1, 1, hd), lambda b, q, h: (h, 0, 0)),  # bq (scaled)
                pl.BlockSpec((1, F, hd), lambda b, q, h: (h, 0, 0)),  # Wk
                pl.BlockSpec((1, 1, hd), lambda b, q, h: (h, 0, 0)),  # bk
                pl.BlockSpec((1, F, hd), lambda b, q, h: (h, 0, 0)),  # Wv
                pl.BlockSpec((1, 1, hd), lambda b, q, h: (h, 0, 0)),  # bv
                pl.BlockSpec((1, hd, F), lambda b, q, h: (h, 0, 0)),  # Wo slice
                pl.BlockSpec((1, F), lambda b, q, h: (0, 0)),         # bo
            ],
            out_specs=pl.BlockSpec((1, Tq, F), lambda b, q, h: (b, q, 0)),
        ),
        compiler_params=cparams_attn,
    )(proj, proj, wq_h, bq_h, wk_h, bk_h, wv_h, bv_h, wo_h, bo)
    return out


def reference_forward(x, params, *, num_heads):
    """Pure-JAX reference with torch.nn.MultiheadAttention semantics and the
    same bf16-operand / f32-accumulation precision policy as the kernels."""
    bf16 = jnp.bfloat16
    F = params["wp_t"].shape[1]
    hd = F // num_heads
    B, S, _ = x.shape

    def mm(a, b):
        return jnp.dot(a.astype(bf16), b.astype(bf16),
                       preferred_element_type=jnp.float32)

    proj = mm(x, params["wp_t"]) + params["bp"][0]           # [B,S,F] f32
    proj = proj.astype(bf16)                                 # stored bf16 between kernels
    qkv = mm(proj, params["win_t"]) + params["bin"][0]       # [B,S,3F] f32
    q, k, v = qkv[..., :F], qkv[..., F:2 * F], qkv[..., 2 * F:]

    def split(t):
        return t.reshape(B, S, num_heads, hd).transpose(0, 2, 1, 3)

    qh = split(q) / math.sqrt(hd)
    kh, vh = split(k), split(v)
    scores = jnp.einsum("bhqd,bhkd->bhqk", qh.astype(bf16), kh.astype(bf16),
                        preferred_element_type=jnp.float32)
    p = jax.nn.softmax(scores, axis=-1)
    ctx = jnp.einsum("bhqk,bhkd->bhqd", p.astype(bf16), vh.astype(bf16),
                     preferred_element_type=jnp.float32)
    ctx = ctx.transpose(0, 2, 1, 3).reshape(B, S, F)
    return mm(ctx, params["wo_t"]) + params["bo"][0]


def init_params(key, hidden_size, feature_dim):
    ks = jax.random.split(key, 6)

    def uni(k, fan_in, shape):
        bound = 1.0 / math.sqrt(fan_in)
        return jax.random.uniform(k, shape, jnp.float32, -bound, bound)

    return {
        # word_projection: Linear(hidden_size, feature_dim), stored transposed
        "wp_t":  uni(ks[0], hidden_size, (hidden_size, feature_dim)),
        "bp":    uni(ks[1], hidden_size, (1, feature_dim)),
        # MHA in_proj: [3F, F] in torch, stored transposed [F, 3F]
        "win_t": uni(ks[2], feature_dim, (feature_dim, 3 * feature_dim)),
        "bin":   uni(ks[3], feature_dim, (1, 3 * feature_dim)),
        # MHA out_proj: Linear(F, F), stored transposed
        "wo_t":  uni(ks[4], feature_dim, (feature_dim, feature_dim)),
        "bo":    uni(ks[5], feature_dim, (1, feature_dim)),
    }


if __name__ == "__main__":
    # Small stand-in shapes consistent with the module: batch=2, seq=8,
    # transformer hidden=32 (stand-in for 768), feature_dim=128 (stand-in for
    # 512, kept a multiple of 128 lanes), num_heads=8 as in AttentionLayer.
    B, S, H, F, NH = 2, 8, 32, 128, 8

    key = jax.random.PRNGKey(0)
    k_x, k_p = jax.random.split(key)
    # Stand-in for transformer(...).last_hidden_state
    word_embeddings = jax.random.normal(k_x, (B, S, H), jnp.float32)
    params = init_params(k_p, H, F)

    out = text_encoder_forward(word_embeddings, params, num_heads=NH)
    out = jax.block_until_ready(out)

    ref = reference_forward(word_embeddings, params, num_heads=NH)
    assert out.shape == (B, S, F)
    max_err = jnp.max(jnp.abs(out - ref))
    assert jnp.allclose(out, ref, atol=2e-2, rtol=2e-2), (
        f"mismatch vs reference (max abs err {max_err})")

    print("KERNEL_OK")
</pallas_src>

<mosaic_0001>
module attributes {stable_mosaic.version = 11 : i64} {
  func.func @_word_projection_kernel(%arg0: i32, %arg1: i32, %arg2: memref<1x8x32xbf16, #tpu.memory_space<vmem>>, %arg3: memref<32x128xbf16, #tpu.memory_space<vmem>>, %arg4: memref<1x128xf32, #tpu.memory_space<vmem>>, %arg5: memref<1x8x128xbf16, #tpu.memory_space<vmem>>) attributes {dimension_semantics = [#tpu.dimension_semantics<parallel>, #tpu.dimension_semantics<parallel>], iteration_bounds = array<i64: 2, 1>, scalar_prefetch = 0 : i64, scratch_operands = 0 : i64, tpu.core_type = #tpu.core_type<tc>, window_params = [{transform_indices = @transform_0, window_bounds = array<i64: 1, 8, 32>}, {pipeline_mode = #tpu.pipeline_mode<synchronous>, transform_indices = @transform_1, window_bounds = array<i64: 32, 128>}, {pipeline_mode = #tpu.pipeline_mode<synchronous>, transform_indices = @transform_2, window_bounds = array<i64: 1, 128>}, {transform_indices = @transform_3, window_bounds = array<i64: 1, 8, 128>}]} {
    %c0 = arith.constant 0 : index
    %c0_0 = arith.constant 0 : index
    %c0_1 = arith.constant 0 : index
    %0 = vector.load %arg2[%c0, %c0_0, %c0_1] : memref<1x8x32xbf16, #tpu.memory_space<vmem>>, vector<1x8x32xbf16>
    %1 = vector.shape_cast %0 : vector<1x8x32xbf16> to vector<8x32xbf16>
    %c0_2 = arith.constant 0 : index
    %c0_3 = arith.constant 0 : index
    %2 = vector.load %arg3[%c0_2, %c0_3] : memref<32x128xbf16, #tpu.memory_space<vmem>>, vector<32x128xbf16>
    %cst = arith.constant dense<0.000000e+00> : vector<8x128xf32>
    %3 = tpu.matmul %1, %2, %cst {dimension_numbers = #tpu.dot_dimension_numbers<[1], [0], [0], [1], [0, 0, 1, 1], [], []>} : vector<8x32xbf16>, vector<32x128xbf16>, vector<8x128xf32> -> vector<8x128xf32>
    %c0_4 = arith.constant 0 : index
    %c0_5 = arith.constant 0 : index
    %4 = vector.load %arg4[%c0_4, %c0_5] : memref<1x128xf32, #tpu.memory_space<vmem>>, vector<1x128xf32>
    %5 = vector.broadcast %4 : vector<1x128xf32> to vector<8x128xf32>
    %6 = arith.addf %3, %5 : vector<8x128xf32>
    %7 = arith.truncf %6 : vector<8x128xf32> to vector<8x128xbf16>
    %c0_6 = arith.constant 0 : index
    %c0_7 = arith.constant 0 : index
    %c0_8 = arith.constant 0 : index
    %8 = vector.load %arg5[%c0_6, %c0_7, %c0_8] : memref<1x8x128xbf16, #tpu.memory_space<vmem>>, vector<1x8x128xbf16>
    %9 = vector.shape_cast %8 : vector<1x8x128xbf16> to vector<8x128xbf16>
    %10 = vector.shape_cast %7 : vector<8x128xbf16> to vector<1x8x128xbf16>
    tpu.vector_store %arg5[%c0_6, %c0_7, %c0_8], %10 {strides = array<i32>} : memref<1x8x128xbf16, #tpu.memory_space<vmem>>, vector<1x8x128xbf16>,
    return
  }
  func.func @transform_0(%arg0: i32, %arg1: i32) -> (i32, i32, i32) {
    %c0_i32 = arith.constant 0 : i32
    %c0_i32_0 = arith.constant 0 : i32
    return %arg0, %arg1, %c0_i32 : i32, i32, i32
  }
  func.func @transform_1(%arg0: i32, %arg1: i32) -> (i32, i32) {
    %c0_i32 = arith.constant 0 : i32
    %c0_i32_0 = arith.constant 0 : i32
    %c0_i32_1 = arith.constant 0 : i32
    return %c0_i32, %c0_i32_0 : i32, i32
  }
  func.func @transform_2(%arg0: i32, %arg1: i32) -> (i32, i32) {
    %c0_i32 = arith.constant 0 : i32
    %c0_i32_0 = arith.constant 0 : i32
    %c0_i32_1 = arith.constant 0 : i32
    return %c0_i32, %c0_i32_0 : i32, i32
  }
  func.func @transform_3(%arg0: i32, %arg1: i32) -> (i32, i32, i32) {
    %c0_i32 = arith.constant 0 : i32
    %c0_i32_0 = arith.constant 0 : i32
    return %arg0, %arg1, %c0_i32 : i32, i32, i32
  }
}

</mosaic_0001>

<llo_original>
// kernel: tpu_custom_call.1
$region0: #{tpu_custom_call.1}
  #allocation0 [shape = 'u32[]', space=smem, size = 0x4, offset = 0x4, fixed_abs, tag = 'smem constant byte address 0x4 - core index']
  #allocation1 [shape = 'u32[144,128]{1,0:T(1,128)}', space=vmem, size = 0x12000, scoped, tag = 'internal scratch']
  %s0 = inlined_call_operand.hbm [shape: bf16[2,8,32], index: 0, kind: input, shape index: {}]
  %s1 = inlined_call_operand.hbm [shape: bf16[32,128], index: 1, kind: input, shape index: {}]
  %s2 = inlined_call_operand.vmem [shape: f32[1,128], index: 2, kind: input, shape index: {}]
  %s3 = inlined_call_operand.hbm [shape: bf16[2,8,128], index: 3, kind: output, shape index: {}]
  %s4 = sld [smem:[#allocation0]]
  $region53: #{tpu_custom_call.1} parent=0
    _
  %s6 = ssub.s32 1, %s4
  %s7 = scalar_select 0, %s6, %s4
  $region1: #{tpu_custom_call.1} parent=0
    #allocation2 [shape = 'u8[4096]{0}', space=vmem, size = 0x1000, scoped, tag = 'input window, operand 0']
    #allocation3 [shape = 's32[2]{0}', space=sflag, size = 0x8, scoped, tag = 'scoped memory for tpu_custom_call.1']
    #allocation4 [shape = 's32[2]{0}', space=sflag, size = 0x8, scoped, tag = 'scoped memory for tpu_custom_call.1']
    #allocation5 [shape = 'u8[8192]{0}', space=vmem, size = 0x2000, scoped, tag = 'input window, operand 1, single buffered']
    #allocation6 [shape = 's32[1]{0}', space=sflag, size = 0x4, scoped, tag = 'scoped memory for tpu_custom_call.1']
    #allocation7 [shape = 'u8[4096]{0}', space=vmem, size = 0x1000, scoped, tag = 'output window, operand 0']
    %8 = vsyncpa [#allocation3], 0
    %s9 = scalar_lea.sflag [#allocation3], 1
    %10 = vsyncpa %s9, 0
    %11 = vsyncpa [#allocation6], 0
    %12 = vsyncpa [#allocation4], 0
    %s13 = scalar_lea.sflag [#allocation4], 1
    %14 = vsyncpa %s13, 0
    loop: start=0, step=1, limit=4
    $region2: #{tpu_custom_call.1} parent=1 // loop_pre_header
      _
    $region3: #{tpu_custom_call.1} parent=1 // loop_header
      %s16 = sphi 0, %s20
      %p17 = scmp.ge.s32.totalorder %s16, 4
      %s23 = sphi 0, %s35
      %s24 = sphi 0, %s31
      %s25 = sphi 0, %s23
      %s26 = sphi 0, %s24
      %s27 = sphi 0, %s25
      %s28 = sphi 0, %s26
      %s40 = sphi 0, %s42
      %s43 = sphi 0, %s40
      %s44 = sphi 0, %s43
      %s60 = sphi 0, %s44
      %s64 = sphi 0, %s64
      %s66 = sphi 0, %s64
      %s67 = sphi 0, %s66
      %s81 = sphi 0, %s67
      %s85 = sphi 0, %s85
      %s87 = sphi 0, %s85
      %s88 = sphi 0, %s87
      %s102 = sphi 0, %s88
      %s110 = sphi 0, %s112
      %s113 = sphi 0, %s110
      %s114 = sphi 0, %s113
      %s130 = sphi 0, %s114
    $region4: #{tpu_custom_call.1} parent=1 // loop_header_branch
      %19 = sbr.rel (%p17) target = $region8
    $region5: #{tpu_custom_call.1} parent=1 // loop_body
      %s21 = ssub.s32 %s16, 1
      %s22 = ssub.s32 %s16, 2
      %s29 = sadd.s32 1, %s24
      %p30 = scmp.ge.s32.totalorder %s29, 1
      %s31 = scalar_select %p30, 0, %s29
      %s32 = sadd.s32 1, %s23
      %s33 = scalar_select %p30, %s32, %s23
      %p34 = scmp.ge.s32.totalorder %s33, 2
      %s35 = scalar_select %p34, 0, %s33
      %s36 = ssub.s32 %s23, %s35
      %s37 = ssub.s32 %s24, %s31
      %s38 = sor.u32 %s36, %s37
      %p39 = scmp.eq.s32.totalorder %s38, 0
      %s41 = sadd.s32 %s40, 1
      %s42 = scalar_select %p39, %s40, %s41
      %p45 = pneg %p39
      %p46 = scmp.eq.s32.totalorder %s16, 1
      %p47 = por %p45, %p46
      %p48 = scmp.ne.s32.totalorder %s40, %s43
      %p49 = scmp.eq.s32.totalorder %s16, 0
      %p50 = por %p48, %p49
      %p51 = scmp.ne.s32.totalorder %s40, %s43
      %p52 = scmp.eq.s32.totalorder %s21, 1
      %p53 = por %p51, %p52
      %p54 = scmp.ne.s32.totalorder %s43, %s44
      %p55 = scmp.eq.s32.totalorder %s21, 0
      %p56 = por %p54, %p55
      %p57 = scmp.ne.s32.totalorder %s43, %s44
      %p58 = scmp.eq.s32.totalorder %s22, 1
      %p59 = por %p57, %p58
      %p61 = scmp.ne.s32.totalorder %s44, %s60
      %p62 = scmp.eq.s32.totalorder %s22, 0
      %p63 = por %p61, %p62
      %s65 = sadd.s32 %s64, 1
      %p68 = scmp.eq.s32.totalorder %s16, 1
      %p69 = scmp.ne.s32.totalorder %s64, %s66
      %p70 = scmp.eq.s32.totalorder %s16, 0
      %p71 = por %p69, %p70
      %p72 = scmp.ne.s32.totalorder %s64, %s66
      %p73 = scmp.eq.s32.totalorder %s21, 1
      %p74 = por %p72, %p73
      %p75 = scmp.ne.s32.totalorder %s66, %s67
      %p76 = scmp.eq.s32.totalorder %s21, 0
      %p77 = por %p75, %p76
      %p78 = scmp.ne.s32.totalorder %s66, %s67
      %p79 = scmp.eq.s32.totalorder %s22, 1
      %p80 = por %p78, %p79
      %p82 = scmp.ne.s32.totalorder %s67, %s81
      %p83 = scmp.eq.s32.totalorder %s22, 0
      %p84 = por %p82, %p83
      %s86 = sadd.s32 %s85, 1
      %p89 = scmp.eq.s32.totalorder %s16, 1
      %p90 = scmp.ne.s32.totalorder %s85, %s87
      %p91 = scmp.eq.s32.totalorder %s16, 0
      %p92 = por %p90, %p91
      %p93 = scmp.ne.s32.totalorder %s85, %s87
      %p94 = scmp.eq.s32.totalorder %s21, 1
      %p95 = por %p93, %p94
      %p96 = scmp.ne.s32.totalorder %s87, %s88
      %p97 = scmp.eq.s32.totalorder %s21, 0
      %p98 = por %p96, %p97
      %p99 = scmp.ne.s32.totalorder %s87, %s88
      %p100 = scmp.eq.s32.totalorder %s22, 1
      %p101 = por %p99, %p100
      %p103 = scmp.ne.s32.totalorder %s88, %s102
      %p104 = scmp.eq.s32.totalorder %s22, 0
      %p105 = por %p103, %p104
      %s106 = ssub.s32 %s23, %s35
      %s107 = ssub.s32 %s24, %s31
      %s108 = sor.u32 %s106, %s107
      %p109 = scmp.eq.s32.totalorder %s108, 0
      %s111 = sadd.s32 %s110, 1
      %s112 = scalar_select %p109, %s110, %s111
      %p115 = pneg %p109
      %p116 = scmp.eq.s32.totalorder %s16, 1
      %p117 = por %p115, %p116
      %p118 = scmp.ne.s32.totalorder %s110, %s113
      %p119 = scmp.eq.s32.totalorder %s16, 0
      %p120 = por %p118, %p119
      %p121 = scmp.ne.s32.totalorder %s110, %s113
      %p122 = scmp.eq.s32.totalorder %s21, 1
      %p123 = por %p121, %p122
      %p124 = scmp.ne.s32.totalorder %s113, %s114
      %p125 = scmp.eq.s32.totalorder %s21, 0
      %p126 = por %p124, %p125
      %p127 = scmp.ne.s32.totalorder %s113, %s114
      %p128 = scmp.eq.s32.totalorder %s22, 1
      %p129 = por %p127, %p128
      %p131 = scmp.ne.s32.totalorder %s114, %s130
      %p132 = scmp.eq.s32.totalorder %s22, 0
      %p133 = por %p131, %p132
      %p134 = scmp.le.s32.totalorder 1, %s16
      %p135 = scmp.lt.s32.totalorder %s16, 3
      %p136 = pnand %p134, %p135
      %p137 = pneg %p136
      // Predicated region
      $region9: #{tpu_custom_call.1} parent=5 // pred_check
        _
      $region10: #{tpu_custom_call.1} parent=5 // pred_check_branch
        %139 = sbr.rel (%p136) target = $region12
      $region11: #{tpu_custom_call.1} parent=5 // pred_region
        %s140 = ssub.s32 %s16, 1
        // Predicated region
        $region13: #{tpu_custom_call.1} parent=11 // pred_check
          %p141 = pneg %p77
        $region14: #{tpu_custom_call.1} parent=11 // pred_check_branch
          %143 = sbr.rel (%p141) target = $region16
        $region15: #{tpu_custom_call.1} parent=11 // pred_region
          %s145 = ssub.s32 256, 256
          %146 = vsyncadd [#allocation6], %s145
          %s147 = sshll.u32 [#allocation5], 4
          %s148 = int_to_ptr.vmem [resolvable:$true] %s147
          %153 = dma.hbm_to_vmem [thread:$0]  %s1, 256, %s148, [#allocation6], 64, 64, 4
        $region16: #{tpu_custom_call.1} parent=11 // pred_fallthru
          _
        // Predicated region
        $region17: #{tpu_custom_call.1} parent=11 // pred_check
          %p154 = pneg %p98
        $region18: #{tpu_custom_call.1} parent=11 // pred_check_branch
          %156 = sbr.rel (%p154) target = $region20
        $region19: #{tpu_custom_call.1} parent=11 // pred_region
          _
        $region20: #{tpu_custom_call.1} parent=11 // pred_fallthru
          _
      $region12: #{tpu_custom_call.1} parent=5 // pred_fallthru
        _
      %p157 = scmp.lt.s32.totalorder %s16, 2
      // Predicated region
      $region21: #{tpu_custom_call.1} parent=5 // pred_check
        %p158 = pneg %p157
      $region22: #{tpu_custom_call.1} parent=5 // pred_check_branch
        %160 = sbr.rel (%p158) target = $region24
      $region23: #{tpu_custom_call.1} parent=5 // pred_region
        // Predicated region
        $region25: #{tpu_custom_call.1} parent=23 // pred_check
          %p161 = pneg %p50
        $region26: #{tpu_custom_call.1} parent=23 // pred_check_branch
          %163 = sbr.rel (%p161) target = $region28
        $region27: #{tpu_custom_call.1} parent=23 // pred_region
          %s164 = sand.u32 %s40, 1
          %s165 = scalar_lea.sflag [#allocation3], %s164
          %s166 = sand.u32 %s40, 1
          %s167 = smul.addr %s166, 4
          %s168 = scalar_lea.vmem [#allocation2], %s167
          %s170 = ssub.s32 64, 64
          %171 = vsyncadd %s165, %s170
          %s172 = sadd.s32 %s24, %s23
          %s173 = smul.addr %s172, 64
          %s174 = scalar_lea.hbm %s0, %s173
          %s176 = sshll.u32 %s168, 4
          %s177 = int_to_ptr.vmem [resolvable:$true] %s176
          %179 = dma.hbm_to_vmem [thread:$0]  %s174, 64, %s177, %s165
        $region28: #{tpu_custom_call.1} parent=23 // pred_fallthru
          _
      $region24: #{tpu_custom_call.1} parent=5 // pred_fallthru
        _
      %p180 = scmp.le.s32.totalorder 1, %s16
      %p181 = scmp.lt.s32.totalorder %s16, 3
      %p182 = pnand %p180, %p181
      %p183 = pneg %p182
      // Predicated region
      $region29: #{tpu_custom_call.1} parent=5 // pred_check
        _
      $region30: #{tpu_custom_call.1} parent=5 // pred_check_branch
        %185 = sbr.rel (%p182) target = $region32
      $region31: #{tpu_custom_call.1} parent=5 // pred_region
        %s186 = ssub.s32 %s16, 1
        %s187 = sand.u32 %s43, 1
        %s188 = scalar_lea.sflag [#allocation3], %s187
        %s189 = sand.u32 %s43, 1
        %s190 = smul.addr %s189, 4
        %s191 = scalar_lea.vmem [#allocation2], %s190
        // Predicated region
        $region33: #{tpu_custom_call.1} parent=31 // pred_check
          %p192 = pneg %p56
        $region34: #{tpu_custom_call.1} parent=31 // pred_check_branch
          %194 = sbr.rel (%p192) target = $region36
        $region35: #{tpu_custom_call.1} parent=31 // pred_region
          %195 = dma.done %s188, 64
        $region36: #{tpu_custom_call.1} parent=31 // pred_fallthru
          _
        // Predicated region
        $region37: #{tpu_custom_call.1} parent=31 // pred_check
          %p196 = pneg %p77
        $region38: #{tpu_custom_call.1} parent=31 // pred_check_branch
          %198 = sbr.rel (%p196) target = $region40
        $region39: #{tpu_custom_call.1} parent=31 // pred_region
          %199 = dma.done [#allocation6], 256
        $region40: #{tpu_custom_call.1} parent=31 // pred_fallthru
          _
        %s200 = sand.u32 %s43, 1
        %s201 = scalar_lea.sflag [#allocation3], %s200
        %s202 = sand.u32 %s43, 1
        %s203 = smul.addr %s202, 4
        %s204 = scalar_lea.vmem [#allocation2], %s203
        %p205 = pneg %p56
        %p206 = pneg %p53
        %p207 = pneg %p77
        %p208 = pneg %p74
        %p209 = pneg %p98
        %p210 = pneg %p95
        %p211 = pneg %p126
        %p212 = pneg %p123
        %s213 = sand.u32 %s113, 1
        %s214 = scalar_lea.sflag [#allocation4], %s213
        %s215 = sand.u32 %s113, 1
        %s216 = smul.addr %s215, 4
        %s217 = scalar_lea.vmem [#allocation7], %s216
        %v219 = vld [vmem:[%s191] sm:$0xf]
        %v220 = vld [vmem:[#allocation5] sm:$0xf]
        %v221 = vld [vmem:[#allocation5 + $0x4] sm:$0xf]
        %v222 = vld [vmem:[#allocation5 + $0x8] sm:$0xf]
        %v223 = vld [vmem:[#allocation5 + $0xc] sm:$0xf]
        %v224 = vld [vmem:[%s2] sm:$0x1]
        %v226 = vlaneseq
        %v227 = vshrl.u32 %v226, 7
        %v228 = vsub.s32 0, %v227
        %v229 = vrot.slane %v224, %v228
        %v235 = vunpack.c.l.b16 %v220
        %v236 = vunpack.c.l.b16 %v221
        %v237 = vunpack.c.l.b16 %v222
        %v238 = vunpack.c.l.b16 %v223
        %v239 = vpack.c.b16 %v236, %v235
        %v240 = vpack.c.b16 %v238, %v237
        %vm243 = vcmask 261120
        %v245 = vsel %vm243, %v219, 0
        %247 = vmatprep.subr.bf16.mxu0 0
        %248 = vmatpush1.bf16.msra.mxu0 %v239
        %249 = vmatprep.subr.bf16.mxu0 0
        %250 = vmatpush1.bf16.msra.mxu0 %v240
        %251 = vmatprep.subr.bf16.mxu0 0
        %252 = vmatpush1.bf16.msra.mxu0 0
        %253 = vmatprep.subr.bf16.mxu0 0
        %254 = vmatpush1.bf16.msra.mxu0 0
        %255 = vmatprep.subr.bf16.mxu0 0
        %256 = vmatpush1.bf16.msra.mxu0 0
        %257 = vmatprep.subr.bf16.mxu0 0
        %258 = vmatpush1.bf16.msra.mxu0 0
        %259 = vmatprep.subr.bf16.mxu0 0
        %260 = vmatpush1.bf16.msra.mxu0 0
        %261 = vmatprep.subr.bf16.mxu0 0
        %262 = vmatpush1.bf16.msra.mxu0 0
        %263 = vmatprep.subr.bf16.mxu0 0
        %264 = vmatpush1.bf16.msra.mxu0 0
        %265 = vmatprep.subr.bf16.mxu0 0
        %266 = vmatpush1.bf16.msra.mxu0 0
        %267 = vmatprep.subr.bf16.mxu0 0
        %268 = vmatpush1.bf16.msra.mxu0 0
        %269 = vmatprep.subr.bf16.mxu0 0
        %270 = vmatpush1.bf16.msra.mxu0 0
        %271 = vmatprep.subr.bf16.mxu0 0
        %272 = vmatpush1.bf16.msra.mxu0 0
        %273 = vmatprep.subr.bf16.mxu0 0
        %274 = vmatpush1.bf16.msra.mxu0 0
        %275 = vmatprep.subr.bf16.mxu0 0
        %276 = vmatpush1.bf16.msra.mxu0 0
        %277 = vmatprep.subr.bf16.mxu0 0
        %278 = vmatpush1.bf16.msra.mxu0 0
        %279 = vmatprep.mubr.bf16.mxu0 0
        %280 = vmatmul.mubr.bf16.gmra.mrb[0].mxu0 %v245
        %v281 = vpop.f32.mrb[0].mxu0
        %v282 = vadd.f32 %v229, %v281
        %v283 = vpop.f32.mrb[0].mxu0
        %v284 = vpop.f32.mrb[0].mxu0
        %v285 = vpop.f32.mrb[0].mxu0
        %286 = vdwg.mxu0
        %v287 = vpack.c.bf16 %v282, %v282
        %288 = vst [vmem:[%s217] sm:$0xf] %v287
        %s289 = sand.u32 %s113, 1
        %s290 = scalar_lea.sflag [#allocation4], %s289
        %s291 = sand.u32 %s113, 1
        %s292 = smul.addr %s291, 4
        %s293 = scalar_lea.vmem [#allocation7], %s292
        // Predicated region
        $region41: #{tpu_custom_call.1} parent=31 // pred_check
          %p294 = pneg %p123
        $region42: #{tpu_custom_call.1} parent=31 // pred_check_branch
          %296 = sbr.rel (%p294) target = $region44
        $region43: #{tpu_custom_call.1} parent=31 // pred_region
          %s298 = ssub.s32 64, 64
          %299 = vsyncadd %s290, %s298
          %s300 = sadd.s32 %s26, %s25
          %s301 = smul.addr %s300, 64
          %s302 = scalar_lea.hbm %s3, %s301
          %s304 = sshll.u32 %s293, 4
          %s305 = int_to_ptr.vmem [resolvable:$true] %s304
          %307 = dma.vmem_to_hbm [thread:$0]  %s305, 64, %s302, %s290
        $region44: #{tpu_custom_call.1} parent=31 // pred_fallthru
          _
      $region32: #{tpu_custom_call.1} parent=5 // pred_fallthru
        _
      %p308 = scmp.le.s32.totalorder 2, %s16
      // Predicated region
      $region45: #{tpu_custom_call.1} parent=5 // pred_check
        %p309 = pneg %p308
      $region46: #{tpu_custom_call.1} parent=5 // pred_check_branch
        %311 = sbr.rel (%p309) target = $region48
      $region47: #{tpu_custom_call.1} parent=5 // pred_region
        %s312 = ssub.s32 %s16, 2
        // Predicated region
        $region49: #{tpu_custom_call.1} parent=47 // pred_check
          %p313 = pneg %p129
        $region50: #{tpu_custom_call.1} parent=47 // pred_check_branch
          %315 = sbr.rel (%p313) target = $region52
        $region51: #{tpu_custom_call.1} parent=47 // pred_region
          %s316 = sand.u32 %s114, 1
          %s317 = scalar_lea.sflag [#allocation4], %s316
          %s318 = sand.u32 %s114, 1
          %s319 = smul.addr %s318, 4
          %s320 = scalar_lea.vmem [#allocation7], %s319
          %321 = dma.done %s317, 64
        $region52: #{tpu_custom_call.1} parent=47 // pred_fallthru
          _
      $region48: #{tpu_custom_call.1} parent=5 // pred_fallthru
        _
    $region6: #{tpu_custom_call.1} parent=1 // loop_footer
      %s20 = sadd.s32 1, %s16
    $region7: #{tpu_custom_call.1} parent=1 // loop_footer_branch
      %15 = sbr.rel target = $region3
    $region8: #{tpu_custom_call.1} parent=1 // loop_exit
      _
    %322 = vsyncpa [#allocation3], 1
    %s323 = scalar_lea.sflag [#allocation3], 1
    %324 = vsyncpa %s323, 1
    %325 = vsyncpa [#allocation6], 1
    %326 = vsyncpa [#allocation4], 1
    %s327 = scalar_lea.sflag [#allocation4], 1
    %328 = vsyncpa %s327, 1

</llo_original>
